<compile_context>
chip_gen: v7x
topology: tpu7x:2x2x1
jax: 0.10.0
libtpu: 0.0.40
codegen_flags: <defaults>
</compile_context>

<pallas_src>
import functools

import jax
import jax.numpy as jnp
from jax.experimental import pallas as pl
from jax.experimental.pallas import tpu as pltpu


def _round_up(n, m):
    return ((n + m - 1) // m) * m


def _fused_masked_mlp_kernel(x_ref, *refs, num_layers):
    # x_ref : (1, Bt, D0p)  activation tile of the current (task, batch) block.
    # refs  : per layer i -> wm (1, Dip, D(i+1)p) per-task masked weight
    #                          (pre-transposed to IN x OUT, compute dtype),
    #                        bias (1, D(i+1)p) f32 [shared];
    #         refs[-1] is the output ref (1, Bt, DLp).
    o_ref = refs[-1]
    h = x_ref[0]                                          # (Bt, D0p) compute dtype
    for i in range(num_layers):                           # static unroll
        wm_ref = refs[2 * i]
        b_ref = refs[2 * i + 1]
        # Pure MXU: masked weight already folded on the host, nothing to mask here.
        y = jnp.dot(h, wm_ref[0], preferred_element_type=jnp.float32)
        y = y + b_ref[...]                                # (1, Dp) broadcasts, f32
        if i < num_layers - 1:
            # relu, then back to the compute dtype so the live intermediate is
            # half-width going into the next MXU pass.
            h = jnp.maximum(y, 0.0).astype(h.dtype)
        else:
            o_ref[0] = y.astype(o_ref.dtype)


def prepare_masked_net_params(fc_params, last_params, neuron_masks,
                              compute_dtype=jnp.bfloat16):
    """One-time host-side prep (hoisted out of the forward path).

    Folds the per-task binary masks into the weights, transposes to (IN, OUT),
    pads every feature dim to a multiple of 128 and casts to the MXU feed
    dtype. Cache/reuse the result across forward calls.
    """
    params = list(fc_params) + [last_params]
    masks = list(neuron_masks)
    assert len(params) == len(masks), "one mask per layer expected"

    dims = [params[0][0].shape[1]] + [w.shape[0] for w, _ in params]
    pdims = [_round_up(d, 128) for d in dims]

    weights, biases = [], []
    for i, ((w, b), m) in enumerate(zip(params, masks)):
        o, fin = w.shape
        pi, po = pdims[i], pdims[i + 1]
        # (T, O, IN) mask * (O, IN) weight -> transpose to (T, IN, OUT).
        wm = jnp.transpose(w[None, :, :].astype(jnp.float32) *
                           m.astype(jnp.float32), (0, 2, 1))
        wm = jnp.pad(wm, ((0, 0), (0, pi - fin), (0, po - o)))
        weights.append(wm.astype(compute_dtype))
        bias = jnp.pad(b.astype(jnp.float32), (0, po - o)).reshape(1, po)
        biases.append(bias)

    return dict(weights=weights, biases=biases, dims=dims, pdims=pdims,
                compute_dtype=compute_dtype)


def _vmem_bytes_estimate(bt, pdims, compute_dtype, out_dtype):
    c = jnp.dtype(compute_dtype).itemsize
    o = jnp.dtype(out_dtype).itemsize
    total = 2 * bt * pdims[0] * c                       # x block, double buffered
    total += 2 * bt * pdims[-1] * o                     # out block, double buffered
    for i in range(len(pdims) - 1):
        total += 2 * pdims[i] * pdims[i + 1] * c        # per-task masked weights
        total += 2 * pdims[i + 1] * 4                   # biases
    total += 2 * bt * max(pdims) * 4                    # live f32 acc + compute h
    return total


def masked_net_forward(x, prepared, task_amount, *, out_dtype=jnp.float32,
                       max_batch_tile=512):
    """Per-task masked MLP forward, fully fused into one Pallas call.

    x        : (all_batch, input_dim)
    prepared : output of prepare_masked_net_params (masks already folded in).
    """
    weights = prepared["weights"]
    biases = prepared["biases"]
    dims = prepared["dims"]
    pdims = prepared["pdims"]
    compute_dtype = prepared["compute_dtype"]
    num_layers = len(weights)

    all_batch, input_dim = x.shape
    assert input_dim == dims[0]
    each = all_batch // task_amount

    # Batch tiling: a single tile when it fits, otherwise <=512-row tiles on a
    # second parallel grid axis (never starve the MXU's M dimension).
    if each <= max_batch_tile:
        bt = _round_up(max(each, 1), 16)
        nb = 1
    else:
        bt = max_batch_tile
        nb = pl.cdiv(each, bt)
    bp = nb * bt

    # Activations -> (T, bp, D0p), zero padded, cast once to the compute dtype
    # (halves activation DMA). Padded rows produce relu(bias) garbage that is
    # sliced off below and never read.
    xt = x.reshape(task_amount, each, input_dim)
    xt = jnp.pad(xt, ((0, 0), (0, bp - each), (0, pdims[0] - input_dim)))
    xt = xt.astype(compute_dtype)

    flat_args = [xt]
    in_specs = [pl.BlockSpec((1, bt, pdims[0]), lambda t, b: (t, b, 0))]
    for i in range(num_layers):
        pi, po = pdims[i], pdims[i + 1]
        flat_args += [weights[i], biases[i]]
        in_specs += [
            # Per-task masked weights: indexed on the task axis only; with the
            # batch axis innermost they are not re-fetched across batch tiles.
            pl.BlockSpec((1, pi, po), lambda t, b: (t, 0, 0)),
            # Shared bias (tiny, constant index map).
            pl.BlockSpec((1, po), lambda t, b: (0, 0)),
        ]

    est = _vmem_bytes_estimate(bt, pdims, compute_dtype, out_dtype)
    vmem_limit = min(max(int(est * 1.3) + (4 << 20), 24 << 20), 96 << 20)

    kernel = functools.partial(_fused_masked_mlp_kernel, num_layers=num_layers)

    out_padded = pl.pallas_call(
        kernel,
        out_shape=jax.ShapeDtypeStruct((task_amount, bp, pdims[-1]), out_dtype),
        grid_spec=pltpu.PrefetchScalarGridSpec(
            num_scalar_prefetch=0,
            grid=(task_amount, nb),
            in_specs=in_specs,
            out_specs=pl.BlockSpec((1, bt, pdims[-1]), lambda t, b: (t, b, 0)),
        ),
        compiler_params=pltpu.CompilerParams(
            dimension_semantics=("parallel", "parallel"),
            vmem_limit_bytes=vmem_limit),
    )(*flat_args)

    # Strip batch/feature padding.
    return out_padded[:, :each, :dims[-1]].reshape(all_batch, dims[-1])


def masked_net_reference(x, fc_params, last_params, neuron_masks, task_amount):
    """Pure-jnp f32 reference mirroring the PyTorch per-task masked forward."""
    all_batch = x.shape[0]
    each = all_batch // task_amount
    out = x.reshape(task_amount, each, -1)
    for (w, b), m in zip(fc_params, neuron_masks[:-1]):
        wm = w[None, :, :] * m                       # (T, O, IN)
        out = jnp.einsum("tbi,toi->tbo", out, wm) + b[None, None, :]
        out = jnp.maximum(out, 0.0)
    w_last, b_last = last_params
    wm = w_last[None, :, :] * neuron_masks[-1]
    out = jnp.einsum("tbi,toi->tbo", out, wm)
    out = out.reshape(all_batch, -1) + b_last[None, :]
    return out


if __name__ == "__main__":
    # Small, module-consistent shapes.
    task_amount = 2
    each_task_batch_size = 4
    all_batch_size = task_amount * each_task_batch_size   # 8
    input_dim = 16
    hidden_sizes = [32, 32]        # base MLP (base.fcs)
    output_shape = 8               # self.last

    key = jax.random.PRNGKey(0)
    keys = iter(jax.random.split(key, 32))

    # Deterministic parameter init (synthetic; not a checkpoint load).
    fc_params = []
    dims = [input_dim] + hidden_sizes
    for din, dout in zip(dims[:-1], dims[1:]):
        w = jax.random.normal(next(keys), (dout, din), jnp.float32) * 0.1
        b = jax.random.normal(next(keys), (dout,), jnp.float32) * 0.01
        fc_params.append((w, b))
    w_last = jax.random.uniform(next(keys), (output_shape, hidden_sizes[-1]),
                                jnp.float32, -0.003, 0.003)
    b_last = jax.random.uniform(next(keys), (output_shape,),
                                jnp.float32, -0.003, 0.003)
    last_params = (w_last, b_last)

    # Per-task binary neuron masks: one per fc layer + one for the last layer.
    neuron_masks = []
    for din, dout in zip(dims[:-1], dims[1:]):
        m = (jax.random.uniform(next(keys), (task_amount, dout, din)) > 0.5)
        neuron_masks.append(m.astype(jnp.float32))
    m_last = (jax.random.uniform(next(keys),
                                 (task_amount, output_shape, hidden_sizes[-1]))
              > 0.5).astype(jnp.float32)
    neuron_masks.append(m_last)

    # Example input: (all_batch_size, input_dim).
    x = jax.random.normal(next(keys), (all_batch_size, input_dim), jnp.float32)

    ref = masked_net_reference(x, fc_params, last_params, neuron_masks,
                               task_amount)

    # 1) Strict correctness check with f32 MXU operands.
    prep_f32 = prepare_masked_net_params(fc_params, last_params, neuron_masks,
                                         compute_dtype=jnp.float32)
    out_f32 = jax.block_until_ready(
        masked_net_forward(x, prep_f32, task_amount))
    assert out_f32.shape == (all_batch_size, output_shape)
    assert jnp.allclose(out_f32, ref, atol=1e-4, rtol=1e-4), \
        "f32-path mismatch vs reference"

    # 2) Fast path (default): bf16 MXU operands, f32 accumulation. Looser
    #    tolerance is expected vs the f32 reference (bf16 operand rounding).
    prep_bf16 = prepare_masked_net_params(fc_params, last_params, neuron_masks,
                                          compute_dtype=jnp.bfloat16)
    out_bf16 = jax.block_until_ready(
        masked_net_forward(x, prep_bf16, task_amount))
    assert out_bf16.shape == (all_batch_size, output_shape)
    assert jnp.allclose(out_bf16, ref, atol=5e-3, rtol=5e-2), \
        "bf16-path mismatch vs reference"

    print("KERNEL_OK")
</pallas_src>

<mosaic_0001>
module attributes {stable_mosaic.version = 11 : i64} {
  func.func @_fused_masked_mlp_kernel(%arg0: i32, %arg1: i32, %arg2: memref<1x16x128xf32, #tpu.memory_space<vmem>>, %arg3: memref<1x128x128xf32, #tpu.memory_space<vmem>>, %arg4: memref<1x128xf32, #tpu.memory_space<vmem>>, %arg5: memref<1x128x128xf32, #tpu.memory_space<vmem>>, %arg6: memref<1x128xf32, #tpu.memory_space<vmem>>, %arg7: memref<1x128x128xf32, #tpu.memory_space<vmem>>, %arg8: memref<1x128xf32, #tpu.memory_space<vmem>>, %arg9: memref<1x16x128xf32, #tpu.memory_space<vmem>>) attributes {dimension_semantics = [#tpu.dimension_semantics<parallel>, #tpu.dimension_semantics<parallel>], iteration_bounds = array<i64: 2, 1>, scalar_prefetch = 0 : i64, scratch_operands = 0 : i64, tpu.core_type = #tpu.core_type<tc>, window_params = [{transform_indices = @transform_0, window_bounds = array<i64: 1, 16, 128>}, {transform_indices = @transform_1, window_bounds = array<i64: 1, 128, 128>}, {pipeline_mode = #tpu.pipeline_mode<synchronous>, transform_indices = @transform_2, window_bounds = array<i64: 1, 128>}, {transform_indices = @transform_3, window_bounds = array<i64: 1, 128, 128>}, {pipeline_mode = #tpu.pipeline_mode<synchronous>, transform_indices = @transform_4, window_bounds = array<i64: 1, 128>}, {transform_indices = @transform_5, window_bounds = array<i64: 1, 128, 128>}, {pipeline_mode = #tpu.pipeline_mode<synchronous>, transform_indices = @transform_6, window_bounds = array<i64: 1, 128>}, {transform_indices = @transform_7, window_bounds = array<i64: 1, 16, 128>}]} {
    %c0 = arith.constant 0 : index
    %c0_0 = arith.constant 0 : index
    %c0_1 = arith.constant 0 : index
    %0 = vector.load %arg2[%c0, %c0_0, %c0_1] : memref<1x16x128xf32, #tpu.memory_space<vmem>>, vector<1x16x128xf32>
    %1 = vector.shape_cast %0 : vector<1x16x128xf32> to vector<16x128xf32>
    %c0_2 = arith.constant 0 : index
    %c0_3 = arith.constant 0 : index
    %c0_4 = arith.constant 0 : index
    %2 = vector.load %arg3[%c0_2, %c0_3, %c0_4] : memref<1x128x128xf32, #tpu.memory_space<vmem>>, vector<1x128x128xf32>
    %3 = vector.shape_cast %2 : vector<1x128x128xf32> to vector<128x128xf32>
    %cst = arith.constant dense<0.000000e+00> : vector<16x128xf32>
    %4 = tpu.matmul %1, %3, %cst {dimension_numbers = #tpu.dot_dimension_numbers<[1], [0], [0], [1], [0, 0, 1, 1], [], []>} : vector<16x128xf32>, vector<128x128xf32>, vector<16x128xf32> -> vector<16x128xf32>
    %c0_5 = arith.constant 0 : index
    %c0_6 = arith.constant 0 : index
    %5 = vector.load %arg4[%c0_5, %c0_6] : memref<1x128xf32, #tpu.memory_space<vmem>>, vector<1x128xf32>
    %6 = vector.broadcast %5 : vector<1x128xf32> to vector<16x128xf32>
    %7 = arith.addf %4, %6 : vector<16x128xf32>
    %cst_7 = arith.constant 0.000000e+00 : f32
    %8 = vector.broadcast %cst_7 : f32 to vector<16x128xf32>
    %9 = arith.maximumf %7, %8 : vector<16x128xf32>
    %c0_8 = arith.constant 0 : index
    %c0_9 = arith.constant 0 : index
    %c0_10 = arith.constant 0 : index
    %10 = vector.load %arg5[%c0_8, %c0_9, %c0_10] : memref<1x128x128xf32, #tpu.memory_space<vmem>>, vector<1x128x128xf32>
    %11 = vector.shape_cast %10 : vector<1x128x128xf32> to vector<128x128xf32>
    %cst_11 = arith.constant dense<0.000000e+00> : vector<16x128xf32>
    %12 = tpu.matmul %9, %11, %cst_11 {dimension_numbers = #tpu.dot_dimension_numbers<[1], [0], [0], [1], [0, 0, 1, 1], [], []>} : vector<16x128xf32>, vector<128x128xf32>, vector<16x128xf32> -> vector<16x128xf32>
    %c0_12 = arith.constant 0 : index
    %c0_13 = arith.constant 0 : index
    %13 = vector.load %arg6[%c0_12, %c0_13] : memref<1x128xf32, #tpu.memory_space<vmem>>, vector<1x128xf32>
    %14 = vector.broadcast %13 : vector<1x128xf32> to vector<16x128xf32>
    %15 = arith.addf %12, %14 : vector<16x128xf32>
    %cst_14 = arith.constant 0.000000e+00 : f32
    %16 = vector.broadcast %cst_14 : f32 to vector<16x128xf32>
    %17 = arith.maximumf %15, %16 : vector<16x128xf32>
    %c0_15 = arith.constant 0 : index
    %c0_16 = arith.constant 0 : index
    %c0_17 = arith.constant 0 : index
    %18 = vector.load %arg7[%c0_15, %c0_16, %c0_17] : memref<1x128x128xf32, #tpu.memory_space<vmem>>, vector<1x128x128xf32>
    %19 = vector.shape_cast %18 : vector<1x128x128xf32> to vector<128x128xf32>
    %cst_18 = arith.constant dense<0.000000e+00> : vector<16x128xf32>
    %20 = tpu.matmul %17, %19, %cst_18 {dimension_numbers = #tpu.dot_dimension_numbers<[1], [0], [0], [1], [0, 0, 1, 1], [], []>} : vector<16x128xf32>, vector<128x128xf32>, vector<16x128xf32> -> vector<16x128xf32>
    %c0_19 = arith.constant 0 : index
    %c0_20 = arith.constant 0 : index
    %21 = vector.load %arg8[%c0_19, %c0_20] : memref<1x128xf32, #tpu.memory_space<vmem>>, vector<1x128xf32>
    %22 = vector.broadcast %21 : vector<1x128xf32> to vector<16x128xf32>
    %23 = arith.addf %20, %22 : vector<16x128xf32>
    %c0_21 = arith.constant 0 : index
    %c0_22 = arith.constant 0 : index
    %c0_23 = arith.constant 0 : index
    %24 = vector.load %arg9[%c0_21, %c0_22, %c0_23] : memref<1x16x128xf32, #tpu.memory_space<vmem>>, vector<1x16x128xf32>
    %25 = vector.shape_cast %24 : vector<1x16x128xf32> to vector<16x128xf32>
    %26 = vector.shape_cast %23 : vector<16x128xf32> to vector<1x16x128xf32>
    tpu.vector_store %arg9[%c0_21, %c0_22, %c0_23], %26 {strides = array<i32>} : memref<1x16x128xf32, #tpu.memory_space<vmem>>, vector<1x16x128xf32>,
    return
  }
  func.func @transform_0(%arg0: i32, %arg1: i32) -> (i32, i32, i32) {
    %c0_i32 = arith.constant 0 : i32
    %c0_i32_0 = arith.constant 0 : i32
    return %arg0, %arg1, %c0_i32 : i32, i32, i32
  }
  func.func @transform_1(%arg0: i32, %arg1: i32) -> (i32, i32, i32) {
    %c0_i32 = arith.constant 0 : i32
    %c0_i32_0 = arith.constant 0 : i32
    %c0_i32_1 = arith.constant 0 : i32
    return %arg0, %c0_i32, %c0_i32_0 : i32, i32, i32
  }
  func.func @transform_2(%arg0: i32, %arg1: i32) -> (i32, i32) {
    %c0_i32 = arith.constant 0 : i32
    %c0_i32_0 = arith.constant 0 : i32
    %c0_i32_1 = arith.constant 0 : i32
    return %c0_i32, %c0_i32_0 : i32, i32
  }
  func.func @transform_3(%arg0: i32, %arg1: i32) -> (i32, i32, i32) {
    %c0_i32 = arith.constant 0 : i32
    %c0_i32_0 = arith.constant 0 : i32
    %c0_i32_1 = arith.constant 0 : i32
    return %arg0, %c0_i32, %c0_i32_0 : i32, i32, i32
  }
  func.func @transform_4(%arg0: i32, %arg1: i32) -> (i32, i32) {
    %c0_i32 = arith.constant 0 : i32
    %c0_i32_0 = arith.constant 0 : i32
    %c0_i32_1 = arith.constant 0 : i32
    return %c0_i32, %c0_i32_0 : i32, i32
  }
  func.func @transform_5(%arg0: i32, %arg1: i32) -> (i32, i32, i32) {
    %c0_i32 = arith.constant 0 : i32
    %c0_i32_0 = arith.constant 0 : i32
    %c0_i32_1 = arith.constant 0 : i32
    return %arg0, %c0_i32, %c0_i32_0 : i32, i32, i32
  }
  func.func @transform_6(%arg0: i32, %arg1: i32) -> (i32, i32) {
    %c0_i32 = arith.constant 0 : i32
    %c0_i32_0 = arith.constant 0 : i32
    %c0_i32_1 = arith.constant 0 : i32
    return %c0_i32, %c0_i32_0 : i32, i32
  }
  func.func @transform_7(%arg0: i32, %arg1: i32) -> (i32, i32, i32) {
    %c0_i32 = arith.constant 0 : i32
    %c0_i32_0 = arith.constant 0 : i32
    return %arg0, %arg1, %c0_i32 : i32, i32, i32
  }
}

</mosaic_0001>

<llo_original>
// kernel: tpu_custom_call.1
$region0: #{tpu_custom_call.1}
  #allocation0 [shape = 'u32[]', space=smem, size = 0x4, offset = 0x4, fixed_abs, tag = 'smem constant byte address 0x4 - core index']
  #allocation1 [shape = 'u32[144,128]{1,0:T(1,128)}', space=vmem, size = 0x12000, scoped, tag = 'internal scratch']
  %s0 = inlined_call_operand.hbm [shape: f32[2,16,128], index: 0, kind: input, shape index: {}]
  %s1 = inlined_call_operand.hbm [shape: f32[2,128,128], index: 1, kind: input, shape index: {}]
  %s2 = inlined_call_operand.vmem [shape: f32[1,128], index: 2, kind: input, shape index: {}]
  %s3 = inlined_call_operand.hbm [shape: f32[2,128,128], index: 3, kind: input, shape index: {}]
  %s4 = inlined_call_operand.vmem [shape: f32[1,128], index: 4, kind: input, shape index: {}]
  %s5 = inlined_call_operand.hbm [shape: f32[2,128,128], index: 5, kind: input, shape index: {}]
  %s6 = inlined_call_operand.vmem [shape: f32[1,128], index: 6, kind: input, shape index: {}]
  %s7 = inlined_call_operand.hbm [shape: f32[2,16,128], index: 7, kind: output, shape index: {}]
  %s8 = sld [smem:[#allocation0]]
  $region77: #{tpu_custom_call.1} parent=0
    _
  %s10 = ssub.s32 1, %s8
  %s11 = scalar_select 0, %s10, %s8
  $region1: #{tpu_custom_call.1} parent=0
    #allocation2 [shape = 'u8[16384]{0}', space=vmem, size = 0x4000, scoped, tag = 'input window, operand 0']
    #allocation3 [shape = 's32[2]{0}', space=sflag, size = 0x8, scoped, tag = 'scoped memory for tpu_custom_call.1']
    #allocation4 [shape = 's32[2]{0}', space=sflag, size = 0x8, scoped, tag = 'scoped memory for tpu_custom_call.1']
    #allocation5 [shape = 'u8[131072]{0}', space=vmem, size = 0x20000, scoped, tag = 'input window, operand 1']
    #allocation6 [shape = 's32[2]{0}', space=sflag, size = 0x8, scoped, tag = 'scoped memory for tpu_custom_call.1']
    #allocation7 [shape = 'u8[131072]{0}', space=vmem, size = 0x20000, scoped, tag = 'input window, operand 3']
    #allocation8 [shape = 'u8[131072]{0}', space=vmem, size = 0x20000, scoped, tag = 'input window, operand 5']
    #allocation9 [shape = 's32[2]{0}', space=sflag, size = 0x8, scoped, tag = 'scoped memory for tpu_custom_call.1']
    #allocation10 [shape = 'u8[16384]{0}', space=vmem, size = 0x4000, scoped, tag = 'output window, operand 0']
    %12 = vsyncpa [#allocation3], 0
    %s13 = scalar_lea.sflag [#allocation3], 1
    %14 = vsyncpa %s13, 0
    %15 = vsyncpa [#allocation6], 0
    %s16 = scalar_lea.sflag [#allocation6], 1
    %17 = vsyncpa %s16, 0
    %18 = vsyncpa [#allocation9], 0
    %s19 = scalar_lea.sflag [#allocation9], 1
    %20 = vsyncpa %s19, 0
    %21 = vsyncpa [#allocation4], 0
    %s22 = scalar_lea.sflag [#allocation4], 1
    %23 = vsyncpa %s22, 0
    loop: start=0, step=1, limit=4
    $region2: #{tpu_custom_call.1} parent=1 // loop_pre_header
      _
    $region3: #{tpu_custom_call.1} parent=1 // loop_header
      %s25 = sphi 0, %s29
      %p26 = scmp.ge.s32.totalorder %s25, 4
      %s32 = sphi 0, %s44
      %s33 = sphi 0, %s40
      %s34 = sphi 0, %s32
      %s35 = sphi 0, %s33
      %s36 = sphi 0, %s34
      %s37 = sphi 0, %s35
      %s49 = sphi 0, %s51
      %s52 = sphi 0, %s49
      %s53 = sphi 0, %s52
      %s69 = sphi 0, %s53
      %s75 = sphi 0, %s77
      %s78 = sphi 0, %s75
      %s79 = sphi 0, %s78
      %s95 = sphi 0, %s79
      %s99 = sphi 0, %s99
      %s101 = sphi 0, %s99
      %s102 = sphi 0, %s101
      %s116 = sphi 0, %s102
      %s122 = sphi 0, %s124
      %s125 = sphi 0, %s122
      %s126 = sphi 0, %s125
      %s142 = sphi 0, %s126
      %s146 = sphi 0, %s146
      %s148 = sphi 0, %s146
      %s149 = sphi 0, %s148
      %s163 = sphi 0, %s149
      %s169 = sphi 0, %s171
      %s172 = sphi 0, %s169
      %s173 = sphi 0, %s172
      %s189 = sphi 0, %s173
      %s193 = sphi 0, %s193
      %s195 = sphi 0, %s193
      %s196 = sphi 0, %s195
      %s210 = sphi 0, %s196
      %s218 = sphi 0, %s220
      %s221 = sphi 0, %s218
      %s222 = sphi 0, %s221
      %s238 = sphi 0, %s222
    $region4: #{tpu_custom_call.1} parent=1 // loop_header_branch
      %28 = sbr.rel (%p26) target = $region8
    $region5: #{tpu_custom_call.1} parent=1 // loop_body
      %s30 = ssub.s32 %s25, 1
      %s31 = ssub.s32 %s25, 2
      %s38 = sadd.s32 1, %s33
      %p39 = scmp.ge.s32.totalorder %s38, 1
      %s40 = scalar_select %p39, 0, %s38
      %s41 = sadd.s32 1, %s32
      %s42 = scalar_select %p39, %s41, %s32
      %p43 = scmp.ge.s32.totalorder %s42, 2
      %s44 = scalar_select %p43, 0, %s42
      %s45 = ssub.s32 %s32, %s44
      %s46 = ssub.s32 %s33, %s40
      %s47 = sor.u32 %s45, %s46
      %p48 = scmp.eq.s32.totalorder %s47, 0
      %s50 = sadd.s32 %s49, 1
      %s51 = scalar_select %p48, %s49, %s50
      %p54 = pneg %p48
      %p55 = scmp.eq.s32.totalorder %s25, 1
      %p56 = por %p54, %p55
      %p57 = scmp.ne.s32.totalorder %s49, %s52
      %p58 = scmp.eq.s32.totalorder %s25, 0
      %p59 = por %p57, %p58
      %p60 = scmp.ne.s32.totalorder %s49, %s52
      %p61 = scmp.eq.s32.totalorder %s30, 1
      %p62 = por %p60, %p61
      %p63 = scmp.ne.s32.totalorder %s52, %s53
      %p64 = scmp.eq.s32.totalorder %s30, 0
      %p65 = por %p63, %p64
      %p66 = scmp.ne.s32.totalorder %s52, %s53
      %p67 = scmp.eq.s32.totalorder %s31, 1
      %p68 = por %p66, %p67
      %p70 = scmp.ne.s32.totalorder %s53, %s69
      %p71 = scmp.eq.s32.totalorder %s31, 0
      %p72 = por %p70, %p71
      %s73 = ssub.s32 %s32, %s44
      %p74 = scmp.eq.s32.totalorder %s73, 0
      %s76 = sadd.s32 %s75, 1
      %s77 = scalar_select %p74, %s75, %s76
      %p80 = pneg %p74
      %p81 = scmp.eq.s32.totalorder %s25, 1
      %p82 = por %p80, %p81
      %p83 = scmp.ne.s32.totalorder %s75, %s78
      %p84 = scmp.eq.s32.totalorder %s25, 0
      %p85 = por %p83, %p84
      %p86 = scmp.ne.s32.totalorder %s75, %s78
      %p87 = scmp.eq.s32.totalorder %s30, 1
      %p88 = por %p86, %p87
      %p89 = scmp.ne.s32.totalorder %s78, %s79
      %p90 = scmp.eq.s32.totalorder %s30, 0
      %p91 = por %p89, %p90
      %p92 = scmp.ne.s32.totalorder %s78, %s79
      %p93 = scmp.eq.s32.totalorder %s31, 1
      %p94 = por %p92, %p93
      %p96 = scmp.ne.s32.totalorder %s79, %s95
      %p97 = scmp.eq.s32.totalorder %s31, 0
      %p98 = por %p96, %p97
      %s100 = sadd.s32 %s99, 1
      %p103 = scmp.eq.s32.totalorder %s25, 1
      %p104 = scmp.ne.s32.totalorder %s99, %s101
      %p105 = scmp.eq.s32.totalorder %s25, 0
      %p106 = por %p104, %p105
      %p107 = scmp.ne.s32.totalorder %s99, %s101
      %p108 = scmp.eq.s32.totalorder %s30, 1
      %p109 = por %p107, %p108
      %p110 = scmp.ne.s32.totalorder %s101, %s102
      %p111 = scmp.eq.s32.totalorder %s30, 0
      %p112 = por %p110, %p111
      %p113 = scmp.ne.s32.totalorder %s101, %s102
      %p114 = scmp.eq.s32.totalorder %s31, 1
      %p115 = por %p113, %p114
      %p117 = scmp.ne.s32.totalorder %s102, %s116
      %p118 = scmp.eq.s32.totalorder %s31, 0
      %p119 = por %p117, %p118
      %s120 = ssub.s32 %s32, %s44
      %p121 = scmp.eq.s32.totalorder %s120, 0
      %s123 = sadd.s32 %s122, 1
      %s124 = scalar_select %p121, %s122, %s123
      %p127 = pneg %p121
      %p128 = scmp.eq.s32.totalorder %s25, 1
      %p129 = por %p127, %p128
      %p130 = scmp.ne.s32.totalorder %s122, %s125
      %p131 = scmp.eq.s32.totalorder %s25, 0
      %p132 = por %p130, %p131
      %p133 = scmp.ne.s32.totalorder %s122, %s125
      %p134 = scmp.eq.s32.totalorder %s30, 1
      %p135 = por %p133, %p134
      %p136 = scmp.ne.s32.totalorder %s125, %s126
      %p137 = scmp.eq.s32.totalorder %s30, 0
      %p138 = por %p136, %p137
      %p139 = scmp.ne.s32.totalorder %s125, %s126
      %p140 = scmp.eq.s32.totalorder %s31, 1
      %p141 = por %p139, %p140
      %p143 = scmp.ne.s32.totalorder %s126, %s142
      %p144 = scmp.eq.s32.totalorder %s31, 0
      %p145 = por %p143, %p144
      %s147 = sadd.s32 %s146, 1
      %p150 = scmp.eq.s32.totalorder %s25, 1
      %p151 = scmp.ne.s32.totalorder %s146, %s148
      %p152 = scmp.eq.s32.totalorder %s25, 0
      %p153 = por %p151, %p152
      %p154 = scmp.ne.s32.totalorder %s146, %s148
      %p155 = scmp.eq.s32.totalorder %s30, 1
      %p156 = por %p154, %p155
      %p157 = scmp.ne.s32.totalorder %s148, %s149
      %p158 = scmp.eq.s32.totalorder %s30, 0
      %p159 = por %p157, %p158
      %p160 = scmp.ne.s32.totalorder %s148, %s149
      %p161 = scmp.eq.s32.totalorder %s31, 1
      %p162 = por %p160, %p161
      %p164 = scmp.ne.s32.totalorder %s149, %s163
      %p165 = scmp.eq.s32.totalorder %s31, 0
      %p166 = por %p164, %p165
      %s167 = ssub.s32 %s32, %s44
      %p168 = scmp.eq.s32.totalorder %s167, 0
      %s170 = sadd.s32 %s169, 1
      %s171 = scalar_select %p168, %s169, %s170
      %p174 = pneg %p168
      %p175 = scmp.eq.s32.totalorder %s25, 1
      %p176 = por %p174, %p175
      %p177 = scmp.ne.s32.totalorder %s169, %s172
      %p178 = scmp.eq.s32.totalorder %s25, 0
      %p179 = por %p177, %p178
      %p180 = scmp.ne.s32.totalorder %s169, %s172
      %p181 = scmp.eq.s32.totalorder %s30, 1
      %p182 = por %p180, %p181
      %p183 = scmp.ne.s32.totalorder %s172, %s173
      %p184 = scmp.eq.s32.totalorder %s30, 0
      %p185 = por %p183, %p184
      %p186 = scmp.ne.s32.totalorder %s172, %s173
      %p187 = scmp.eq.s32.totalorder %s31, 1
      %p188 = por %p186, %p187
      %p190 = scmp.ne.s32.totalorder %s173, %s189
      %p191 = scmp.eq.s32.totalorder %s31, 0
      %p192 = por %p190, %p191
      %s194 = sadd.s32 %s193, 1
      %p197 = scmp.eq.s32.totalorder %s25, 1
      %p198 = scmp.ne.s32.totalorder %s193, %s195
      %p199 = scmp.eq.s32.totalorder %s25, 0
      %p200 = por %p198, %p199
      %p201 = scmp.ne.s32.totalorder %s193, %s195
      %p202 = scmp.eq.s32.totalorder %s30, 1
      %p203 = por %p201, %p202
      %p204 = scmp.ne.s32.totalorder %s195, %s196
      %p205 = scmp.eq.s32.totalorder %s30, 0
      %p206 = por %p204, %p205
      %p207 = scmp.ne.s32.totalorder %s195, %s196
      %p208 = scmp.eq.s32.totalorder %s31, 1
      %p209 = por %p207, %p208
      %p211 = scmp.ne.s32.totalorder %s196, %s210
      %p212 = scmp.eq.s32.totalorder %s31, 0
      %p213 = por %p211, %p212
      %s214 = ssub.s32 %s32, %s44
      %s215 = ssub.s32 %s33, %s40
      %s216 = sor.u32 %s214, %s215
      %p217 = scmp.eq.s32.totalorder %s216, 0
      %s219 = sadd.s32 %s218, 1
      %s220 = scalar_select %p217, %s218, %s219
      %p223 = pneg %p217
      %p224 = scmp.eq.s32.totalorder %s25, 1
      %p225 = por %p223, %p224
      %p226 = scmp.ne.s32.totalorder %s218, %s221
      %p227 = scmp.eq.s32.totalorder %s25, 0
      %p228 = por %p226, %p227
      %p229 = scmp.ne.s32.totalorder %s218, %s221
      %p230 = scmp.eq.s32.totalorder %s30, 1
      %p231 = por %p229, %p230
      %p232 = scmp.ne.s32.totalorder %s221, %s222
      %p233 = scmp.eq.s32.totalorder %s30, 0
      %p234 = por %p232, %p233
      %p235 = scmp.ne.s32.totalorder %s221, %s222
      %p236 = scmp.eq.s32.totalorder %s31, 1
      %p237 = por %p235, %p236
      %p239 = scmp.ne.s32.totalorder %s222, %s238
      %p240 = scmp.eq.s32.totalorder %s31, 0
      %p241 = por %p239, %p240
      %p242 = scmp.le.s32.totalorder 1, %s25
      %p243 = scmp.lt.s32.totalorder %s25, 3
      %p244 = pnand %p242, %p243
      %p245 = pneg %p244
      // Predicated region
      $region9: #{tpu_custom_call.1} parent=5 // pred_check
        _
      $region10: #{tpu_custom_call.1} parent=5 // pred_check_branch
        %247 = sbr.rel (%p244) target = $region12
      $region11: #{tpu_custom_call.1} parent=5 // pred_region
        %s248 = ssub.s32 %s25, 1
        // Predicated region
        $region13: #{tpu_custom_call.1} parent=11 // pred_check
          %p249 = pneg %p112
        $region14: #{tpu_custom_call.1} parent=11 // pred_check_branch
          %251 = sbr.rel (%p249) target = $region16
        $region15: #{tpu_custom_call.1} parent=11 // pred_region
          _
        $region16: #{tpu_custom_call.1} parent=11 // pred_fallthru
          _
        // Predicated region
        $region17: #{tpu_custom_call.1} parent=11 // pred_check
          %p252 = pneg %p159
        $region18: #{tpu_custom_call.1} parent=11 // pred_check_branch
          %254 = sbr.rel (%p252) target = $region20
        $region19: #{tpu_custom_call.1} parent=11 // pred_region
          _
        $region20: #{tpu_custom_call.1} parent=11 // pred_fallthru
          _
        // Predicated region
        $region21: #{tpu_custom_call.1} parent=11 // pred_check
          %p255 = pneg %p206
        $region22: #{tpu_custom_call.1} parent=11 // pred_check_branch
          %257 = sbr.rel (%p255) target = $region24
        $region23: #{tpu_custom_call.1} parent=11 // pred_region
          _
        $region24: #{tpu_custom_call.1} parent=11 // pred_fallthru
          _
      $region12: #{tpu_custom_call.1} parent=5 // pred_fallthru
        _
      %p258 = scmp.lt.s32.totalorder %s25, 2
      // Predicated region
      $region25: #{tpu_custom_call.1} parent=5 // pred_check
        %p259 = pneg %p258
      $region26: #{tpu_custom_call.1} parent=5 // pred_check_branch
        %261 = sbr.rel (%p259) target = $region28
      $region27: #{tpu_custom_call.1} parent=5 // pred_region
        // Predicated region
        $region29: #{tpu_custom_call.1} parent=27 // pred_check
          %p262 = pneg %p59
        $region30: #{tpu_custom_call.1} parent=27 // pred_check_branch
          %264 = sbr.rel (%p262) target = $region32
        $region31: #{tpu_custom_call.1} parent=27 // pred_region
          %s265 = sand.u32 %s49, 1
          %s266 = scalar_lea.sflag [#allocation3], %s265
          %s267 = sand.u32 %s49, 1
          %s268 = smul.addr %s267, 16
          %s269 = scalar_lea.vmem [#allocation2], %s268
          %s270 = smul.u32 2, %s33
          %s272 = ssub.s32 256, 256
          %273 = vsyncadd %s266, %s272
          %s274 = smul.addr %s32, 2
          %s275 = sadd.s32 %s270, %s274
          %s276 = smul.addr %s275, 128
          %s277 = scalar_lea.hbm %s0, %s276
          %s278 = sshll.u32 %s269, 4
          %s279 = int_to_ptr.vmem [resolvable:$true] %s278
          %284 = dma.hbm_to_vmem [thread:$0]  %s277, 256, %s279, %s266, 128, 128, 8
        $region32: #{tpu_custom_call.1} parent=27 // pred_fallthru
          _
        // Predicated region
        $region33: #{tpu_custom_call.1} parent=27 // pred_check
          %p285 = pneg %p85
        $region34: #{tpu_custom_call.1} parent=27 // pred_check_branch
          %287 = sbr.rel (%p285) target = $region36
        $region35: #{tpu_custom_call.1} parent=27 // pred_region
          %s288 = sand.u32 %s25, 1
          %s289 = scalar_lea.sflag [#allocation6], %s288
          %s290 = sand.u32 %s75, 1
          %s291 = smul.addr %s290, 128
          %s292 = scalar_lea.vmem [#allocation5], %s291
          %s294 = ssub.s32 2048, 2048
          %295 = vsyncadd %s289, %s294
          %s296 = smul.addr %s32, 16
          %s297 = smul.addr %s296, 128
          %s298 = scalar_lea.hbm %s1, %s297
          %s299 = sshll.u32 %s292, 4
          %s300 = int_to_ptr.vmem [resolvable:$true] %s299
          %305 = dma.hbm_to_vmem [thread:$0]  %s298, 2048, %s300, %s289, 128, 128, 8
        $region36: #{tpu_custom_call.1} parent=27 // pred_fallthru
          _
        // Predicated region
        $region37: #{tpu_custom_call.1} parent=27 // pred_check
          %p306 = pneg %p132
        $region38: #{tpu_custom_call.1} parent=27 // pred_check_branch
          %308 = sbr.rel (%p306) target = $region40
        $region39: #{tpu_custom_call.1} parent=27 // pred_region
          %s309 = sand.u32 %s25, 1
          %s310 = scalar_lea.sflag [#allocation6], %s309
          %s311 = sand.u32 %s122, 1
          %s312 = smul.addr %s311, 128
          %s313 = scalar_lea.vmem [#allocation7], %s312
          %s315 = ssub.s32 2048, 2048
          %316 = vsyncadd %s310, %s315
          %s317 = smul.addr %s32, 16
          %s318 = smul.addr %s317, 128
          %s319 = scalar_lea.hbm %s3, %s318
          %s320 = sshll.u32 %s313, 4
          %s321 = int_to_ptr.vmem [resolvable:$true] %s320
          %326 = dma.hbm_to_vmem [thread:$0]  %s319, 2048, %s321, %s310, 128, 128, 8
        $region40: #{tpu_custom_call.1} parent=27 // pred_fallthru
          _
        // Predicated region
        $region41: #{tpu_custom_call.1} parent=27 // pred_check
          %p327 = pneg %p179
        $region42: #{tpu_custom_call.1} parent=27 // pred_check_branch
          %329 = sbr.rel (%p327) target = $region44
        $region43: #{tpu_custom_call.1} parent=27 // pred_region
          %s330 = sand.u32 %s169, 1
          %s331 = scalar_lea.sflag [#allocation9], %s330
          %s332 = sand.u32 %s169, 1
          %s333 = smul.addr %s332, 128
          %s334 = scalar_lea.vmem [#allocation8], %s333
          %s336 = ssub.s32 2048, 2048
          %337 = vsyncadd %s331, %s336
          %s338 = smul.addr %s32, 16
          %s339 = smul.addr %s338, 128
          %s340 = scalar_lea.hbm %s5, %s339
          %s341 = sshll.u32 %s334, 4
          %s342 = int_to_ptr.vmem [resolvable:$true] %s341
          %347 = dma.hbm_to_vmem [thread:$0]  %s340, 2048, %s342, %s331, 128, 128, 8
        $region44: #{tpu_custom_call.1} parent=27 // pred_fallthru
          _
      $region28: #{tpu_custom_call.1} parent=5 // pred_fallthru
        _
      %p348 = scmp.le.s32.totalorder 1, %s25
      %p349 = scmp.lt.s32.totalorder %s25, 3
      %p350 = pnand %p348, %p349
      %p351 = pneg %p350
      // Predicated region
      $region45: #{tpu_custom_call.1} parent=5 // pred_check
        _
      $region46: #{tpu_custom_call.1} parent=5 // pred_check_branch
        %353 = sbr.rel (%p350) target = $region48
      $region47: #{tpu_custom_call.1} parent=5 // pred_region
        %s354 = ssub.s32 %s25, 1
        %s355 = sand.u32 %s52, 1
        %s356 = scalar_lea.sflag [#allocation3], %s355
        %s357 = sand.u32 %s52, 1
        %s358 = smul.addr %s357, 16
        %s359 = scalar_lea.vmem [#allocation2], %s358
        // Predicated region
        $region49: #{tpu_custom_call.1} parent=47 // pred_check
          %p360 = pneg %p65
        $region50: #{tpu_custom_call.1} parent=47 // pred_check_branch
          %362 = sbr.rel (%p360) target = $region52
        $region51: #{tpu_custom_call.1} parent=47 // pred_region
          %363 = dma.done %s356, 256
        $region52: #{tpu_custom_call.1} parent=47 // pred_fallthru
          _
        %s364 = sand.u32 %s30, 1
        %s365 = scalar_lea.sflag [#allocation6], %s364
        %s366 = sand.u32 %s78, 1
        %s367 = smul.addr %s366, 128
        %s368 = scalar_lea.vmem [#allocation5], %s367
        // Predicated region
        $region53: #{tpu_custom_call.1} parent=47 // pred_check
          %p369 = pneg %p91
        $region54: #{tpu_custom_call.1} parent=47 // pred_check_branch
          %371 = sbr.rel (%p369) target = $region56
        $region55: #{tpu_custom_call.1} parent=47 // pred_region
          %372 = dma.done %s365, 2048
        $region56: #{tpu_custom_call.1} parent=47 // pred_fallthru
          _
        %s373 = sand.u32 %s30, 1
        %s374 = scalar_lea.sflag [#allocation6], %s373
        %s375 = sand.u32 %s125, 1
        %s376 = smul.addr %s375, 128
        %s377 = scalar_lea.vmem [#allocation7], %s376
        // Predicated region
        $region57: #{tpu_custom_call.1} parent=47 // pred_check
          %p378 = pneg %p138
        $region58: #{tpu_custom_call.1} parent=47 // pred_check_branch
          %380 = sbr.rel (%p378) target = $region60
        $region59: #{tpu_custom_call.1} parent=47 // pred_region
          %381 = dma.done %s374, 2048
        $region60: #{tpu_custom_call.1} parent=47 // pred_fallthru
          _
        %s382 = sand.u32 %s172, 1
        %s383 = scalar_lea.sflag [#allocation9], %s382
        %s384 = sand.u32 %s172, 1
        %s385 = smul.addr %s384, 128
        %s386 = scalar_lea.vmem [#allocation8], %s385
        // Predicated region
        $region61: #{tpu_custom_call.1} parent=47 // pred_check
          %p387 = pneg %p185
        $region62: #{tpu_custom_call.1} parent=47 // pred_check_branch
          %389 = sbr.rel (%p387) target = $region64
        $region63: #{tpu_custom_call.1} parent=47 // pred_region
          %390 = dma.done %s383, 2048
        $region64: #{tpu_custom_call.1} parent=47 // pred_fallthru
          _
        %s391 = sand.u32 %s52, 1
        %s392 = scalar_lea.sflag [#allocation3], %s391
        %s393 = sand.u32 %s52, 1
        %s394 = smul.addr %s393, 16
        %s395 = scalar_lea.vmem [#allocation2], %s394
        %p396 = pneg %p65
        %p397 = pneg %p62
        %s398 = sand.u32 %s30, 1
        %s399 = scalar_lea.sflag [#allocation6], %s398
        %s400 = sand.u32 %s78, 1
        %s401 = smul.addr %s400, 128
        %s402 = scalar_lea.vmem [#allocation5], %s401
        %p403 = pneg %p91
        %p404 = pneg %p88
        %p405 = pneg %p112
        %p406 = pneg %p109
        %s407 = sand.u32 %s30, 1
        %s408 = scalar_lea.sflag [#allocation6], %s407
        %s409 = sand.u32 %s125, 1
        %s410 = smul.addr %s409, 128
        %s411 = scalar_lea.vmem [#allocation7], %s410
        %p412 = pneg %p138
        %p413 = pneg %p135
        %p414 = pneg %p159
        %p415 = pneg %p156
        %s416 = sand.u32 %s172, 1
        %s417 = scalar_lea.sflag [#allocation9], %s416
        %s418 = sand.u32 %s172, 1
        %s419 = smul.addr %s418, 128
        %s420 = scalar_lea.vmem [#allocation8], %s419
        %p421 = pneg %p185
        %p422 = pneg %p182
        %p423 = pneg %p206
        %p424 = pneg %p203
        %p425 = pneg %p234
        %p426 = pneg %p231
        %s427 = sand.u32 %s221, 1
        %s428 = scalar_lea.sflag [#allocation4], %s427
        %s429 = sand.u32 %s221, 1
        %s430 = smul.addr %s429, 16
        %s431 = scalar_lea.vmem [#allocation10], %s430
        %s432 = smul.u32 2, %s35
        %s433 = smul.u32 2, %s35
        %v434 = vld [vmem:[%s359] sm:$0xff]
        %v435 = vld [vmem:[%s359 + $0x8] sm:$0xff]
        %v436 = vld [vmem:[%s368] sm:$0xff]
        %v437 = vld [vmem:[%s368 + $0x8] sm:$0xff]
        %v438 = vld [vmem:[%s368 + $0x10] sm:$0xff]
        %v439 = vld [vmem:[%s368 + $0x18] sm:$0xff]
        %v440 = vld [vmem:[%s368 + $0x20] sm:$0xff]
        %v441 = vld [vmem:[%s368 + $0x28] sm:$0xff]
        %v442 = vld [vmem:[%s368 + $0x30] sm:$0xff]
        %v443 = vld [vmem:[%s368 + $0x38] sm:$0xff]
        %v444 = vld [vmem:[%s368 + $0x40] sm:$0xff]
        %v445 = vld [vmem:[%s368 + $0x48] sm:$0xff]
        %v446 = vld [vmem:[%s368 + $0x50] sm:$0xff]
        %v447 = vld [vmem:[%s368 + $0x58] sm:$0xff]
        %v448 = vld [vmem:[%s368 + $0x60] sm:$0xff]
        %v449 = vld [vmem:[%s368 + $0x68] sm:$0xff]
        %v450 = vld [vmem:[%s368 + $0x70] sm:$0xff]
        %v451 = vld [vmem:[%s368 + $0x78] sm:$0xff]
        %v452 = vld [vmem:[%s2] sm:$0x1]
        %v454 = vlaneseq
        %v455 = vshrl.u32 %v454, 7
        %v456 = vsub.s32 0, %v455
        %v457 = vrot.slane %v452, %v456
        %459 = vmatprep.subr.mxu0 0.0
        %460 = vmatpush1.msra.mxu0 %v436
        %461 = vmatprep.subr.mxu0 0.0
        %462 = vmatpush1.msra.mxu0 %v437
        %463 = vmatprep.subr.mxu0 0.0
        %464 = vmatpush1.msra.mxu0 %v438
        %465 = vmatprep.subr.mxu0 0.0
        %466 = vmatpush1.msra.mxu0 %v439
        %467 = vmatprep.subr.mxu0 0.0
        %468 = vmatpush1.msra.mxu0 %v440
        %469 = vmatprep.subr.mxu0 0.0
        %470 = vmatpush1.msra.mxu0 %v441
        %471 = vmatprep.subr.mxu0 0.0
        %472 = vmatpush1.msra.mxu0 %v442
        %473 = vmatprep.subr.mxu0 0.0
        %474 = vmatpush1.msra.mxu0 %v443
        %475 = vmatprep.subr.mxu0 0.0
        %476 = vmatpush1.msra.mxu0 %v444
        %477 = vmatprep.subr.mxu0 0.0
        %478 = vmatpush1.msra.mxu0 %v445
        %479 = vmatprep.subr.mxu0 0.0
        %480 = vmatpush1.msra.mxu0 %v446
        %481 = vmatprep.subr.mxu0 0.0
        %482 = vmatpush1.msra.mxu0 %v447
        %483 = vmatprep.subr.mxu0 0.0
        %484 = vmatpush1.msra.mxu0 %v448
        %485 = vmatprep.subr.mxu0 0.0
        %486 = vmatpush1.msra.mxu0 %v449
        %487 = vmatprep.subr.mxu0 0.0
        %488 = vmatpush1.msra.mxu0 %v450
        %489 = vmatprep.subr.mxu0 0.0
        %490 = vmatpush1.msra.mxu0 %v451
        %491 = vmatprep.subr.mxu0 0.0
        %492 = vmatpush1.msra.mxu0 0.0
        %493 = vmatprep.subr.mxu0 0.0
        %494 = vmatpush1.msra.mxu0 0.0
        %495 = vmatprep.subr.mxu0 0.0
        %496 = vmatpush1.msra.mxu0 0.0
        %497 = vmatprep.subr.mxu0 0.0
        %498 = vmatpush1.msra.mxu0 0.0
        %499 = vmatprep.subr.mxu0 0.0
        %500 = vmatpush1.msra.mxu0 0.0
        %501 = vmatprep.subr.mxu0 0.0
        %502 = vmatpush1.msra.mxu0 0.0
        %503 = vmatprep.subr.mxu0 0.0
        %504 = vmatpush1.msra.mxu0 0.0
        %505 = vmatprep.subr.mxu0 0.0
        %506 = vmatpush1.msra.mxu0 0.0
        %507 = vmatprep.subr.mxu0 0.0
        %508 = vmatpush1.msra.mxu0 0.0
        %509 = vmatprep.subr.mxu0 0.0
        %510 = vmatpush1.msra.mxu0 0.0
        %511 = vmatprep.subr.mxu0 0.0
        %512 = vmatpush1.msra.mxu0 0.0
        %513 = vmatprep.subr.mxu0 0.0
        %514 = vmatpush1.msra.mxu0 0.0
        %515 = vmatprep.subr.mxu0 0.0
        %516 = vmatpush1.msra.mxu0 0.0
        %517 = vmatprep.subr.mxu0 0.0
        %518 = vmatpush1.msra.mxu0 0.0
        %519 = vmatprep.subr.mxu0 0.0
        %520 = vmatpush1.msra.mxu0 0.0
        %521 = vmatprep.subr.mxu0 0.0
        %522 = vmatpush1.msra.mxu0 0.0
        %523 = vmatprep.mubr.f32.mxu0 0.0
        %524 = vmatmul.mubr.f32.gmra.mrb[0].mxu0 %v434
        %v525 = vpop.f32.mrb[0].mxu0
        %v526 = vadd.f32 %v457, %v525
        %v527 = vpop.f32.mrb[0].mxu0
        %528 = vmatprep.mubr.f32.mxu0 0.0
        %529 = vmatmul.mubr.f32.gmra.mrb[0].mxu0 %v435
        %v530 = vpop.f32.mrb[0].mxu0
        %v531 = vadd.f32 %v457, %v530
        %v532 = vpop.f32.mrb[0].mxu0
        %533 = vdwg.mxu0
        %v534 = vmax.f32 %v526, 0.0
        %v535 = vmax.f32 %v531, 0.0
        %v536 = vld [vmem:[%s377] sm:$0xff]
        %v537 = vld [vmem:[%s377 + $0x8] sm:$0xff]
        %v538 = vld [vmem:[%s377 + $0x10] sm:$0xff]
        %v539 = vld [vmem:[%s377 + $0x18] sm:$0xff]
        %v540 = vld [vmem:[%s377 + $0x20] sm:$0xff]
        %v541 = vld [vmem:[%s377 + $0x28] sm:$0xff]
        %v542 = vld [vmem:[%s377 + $0x30] sm:$0xff]
        %v543 = vld [vmem:[%s377 + $0x38] sm:$0xff]
        %v544 = vld [vmem:[%s377 + $0x40] sm:$0xff]
        %v545 = vld [vmem:[%s377 + $0x48] sm:$0xff]
        %v546 = vld [vmem:[%s377 + $0x50] sm:$0xff]
        %v547 = vld [vmem:[%s377 + $0x58] sm:$0xff]
        %v548 = vld [vmem:[%s377 + $0x60] sm:$0xff]
        %v549 = vld [vmem:[%s377 + $0x68] sm:$0xff]
        %v550 = vld [vmem:[%s377 + $0x70] sm:$0xff]
        %v551 = vld [vmem:[%s377 + $0x78] sm:$0xff]
        %v552 = vld [vmem:[%s4] sm:$0x1]
        %v554 = vlaneseq
        %v555 = vshrl.u32 %v554, 7
        %v556 = vsub.s32 0, %v555
        %v557 = vrot.slane %v552, %v556
        %559 = vmatprep.subr.mxu0 0.0
        %560 = vmatpush1.msra.mxu0 %v536
        %561 = vmatprep.subr.mxu0 0.0
        %562 = vmatpush1.msra.mxu0 %v537
        %563 = vmatprep.subr.mxu0 0.0
        %564 = vmatpush1.msra.mxu0 %v538
        %565 = vmatprep.subr.mxu0 0.0
        %566 = vmatpush1.msra.mxu0 %v539
        %567 = vmatprep.subr.mxu0 0.0
        %568 = vmatpush1.msra.mxu0 %v540
        %569 = vmatprep.subr.mxu0 0.0
        %570 = vmatpush1.msra.mxu0 %v541
        %571 = vmatprep.subr.mxu0 0.0
        %572 = vmatpush1.msra.mxu0 %v542
        %573 = vmatprep.subr.mxu0 0.0
        %574 = vmatpush1.msra.mxu0 %v543
        %575 = vmatprep.subr.mxu0 0.0
        %576 = vmatpush1.msra.mxu0 %v544
        %577 = vmatprep.subr.mxu0 0.0
        %578 = vmatpush1.msra.mxu0 %v545
        %579 = vmatprep.subr.mxu0 0.0
        %580 = vmatpush1.msra.mxu0 %v546
        %581 = vmatprep.subr.mxu0 0.0
        %582 = vmatpush1.msra.mxu0 %v547
        %583 = vmatprep.subr.mxu0 0.0
        %584 = vmatpush1.msra.mxu0 %v548
        %585 = vmatprep.subr.mxu0 0.0
        %586 = vmatpush1.msra.mxu0 %v549
        %587 = vmatprep.subr.mxu0 0.0
        %588 = vmatpush1.msra.mxu0 %v550
        %589 = vmatprep.subr.mxu0 0.0
        %590 = vmatpush1.msra.mxu0 %v551
        %591 = vmatprep.subr.mxu0 0.0
        %592 = vmatpush1.msra.mxu0 0.0
        %593 = vmatprep.subr.mxu0 0.0
        %594 = vmatpush1.msra.mxu0 0.0
        %595 = vmatprep.subr.mxu0 0.0
        %596 = vmatpush1.msra.mxu0 0.0
        %597 = vmatprep.subr.mxu0 0.0
        %598 = vmatpush1.msra.mxu0 0.0
        %599 = vmatprep.subr.mxu0 0.0
        %600 = vmatpush1.msra.mxu0 0.0
        %601 = vmatprep.subr.mxu0 0.0
        %602 = vmatpush1.msra.mxu0 0.0
        %603 = vmatprep.subr.mxu0 0.0
        %604 = vmatpush1.msra.mxu0 0.0
        %605 = vmatprep.subr.mxu0 0.0
        %606 = vmatpush1.msra.mxu0 0.0
        %607 = vmatprep.subr.mxu0 0.0
        %608 = vmatpush1.msra.mxu0 0.0
        %609 = vmatprep.subr.mxu0 0.0
        %610 = vmatpush1.msra.mxu0 0.0
        %611 = vmatprep.subr.mxu0 0.0
        %612 = vmatpush1.msra.mxu0 0.0
        %613 = vmatprep.subr.mxu0 0.0
        %614 = vmatpush1.msra.mxu0 0.0
        %615 = vmatprep.subr.mxu0 0.0
        %616 = vmatpush1.msra.mxu0 0.0
        %617 = vmatprep.subr.mxu0 0.0
        %618 = vmatpush1.msra.mxu0 0.0
        %619 = vmatprep.subr.mxu0 0.0
        %620 = vmatpush1.msra.mxu0 0.0
        %621 = vmatprep.subr.mxu0 0.0
        %622 = vmatpush1.msra.mxu0 0.0
        %623 = vmatprep.mubr.f32.mxu0 0.0
        %624 = vmatmul.mubr.f32.gmra.mrb[0].mxu0 %v534
        %v625 = vpop.f32.mrb[0].mxu0
        %v626 = vadd.f32 %v557, %v625
        %v627 = vpop.f32.mrb[0].mxu0
        %628 = vmatprep.mubr.f32.mxu0 0.0
        %629 = vmatmul.mubr.f32.gmra.mrb[0].mxu0 %v535
        %v630 = vpop.f32.mrb[0].mxu0
        %v631 = vadd.f32 %v557, %v630
        %v632 = vpop.f32.mrb[0].mxu0
        %633 = vdwg.mxu0
        %v634 = vmax.f32 %v626, 0.0
        %v635 = vmax.f32 %v631, 0.0
        %v636 = vld [vmem:[%s386] sm:$0xff]
        %v637 = vld [vmem:[%s386 + $0x8] sm:$0xff]
        %v638 = vld [vmem:[%s386 + $0x10] sm:$0xff]
        %v639 = vld [vmem:[%s386 + $0x18] sm:$0xff]
        %v640 = vld [vmem:[%s386 + $0x20] sm:$0xff]
        %v641 = vld [vmem:[%s386 + $0x28] sm:$0xff]
        %v642 = vld [vmem:[%s386 + $0x30] sm:$0xff]
        %v643 = vld [vmem:[%s386 + $0x38] sm:$0xff]
        %v644 = vld [vmem:[%s386 + $0x40] sm:$0xff]
        %v645 = vld [vmem:[%s386 + $0x48] sm:$0xff]
        %v646 = vld [vmem:[%s386 + $0x50] sm:$0xff]
        %v647 = vld [vmem:[%s386 + $0x58] sm:$0xff]
        %v648 = vld [vmem:[%s386 + $0x60] sm:$0xff]
        %v649 = vld [vmem:[%s386 + $0x68] sm:$0xff]
        %v650 = vld [vmem:[%s386 + $0x70] sm:$0xff]
        %v651 = vld [vmem:[%s386 + $0x78] sm:$0xff]
        %v652 = vld [vmem:[%s6] sm:$0x1]
        %v654 = vlaneseq
        %v655 = vshrl.u32 %v654, 7
        %v656 = vsub.s32 0, %v655
        %v657 = vrot.slane %v652, %v656
        %659 = vmatprep.subr.mxu0 0.0
        %660 = vmatpush1.msra.mxu0 %v636
        %661 = vmatprep.subr.mxu0 0.0
        %662 = vmatpush1.msra.mxu0 %v637
        %663 = vmatprep.subr.mxu0 0.0
        %664 = vmatpush1.msra.mxu0 %v638
        %665 = vmatprep.subr.mxu0 0.0
        %666 = vmatpush1.msra.mxu0 %v639
        %667 = vmatprep.subr.mxu0 0.0
        %668 = vmatpush1.msra.mxu0 %v640
        %669 = vmatprep.subr.mxu0 0.0
        %670 = vmatpush1.msra.mxu0 %v641
        %671 = vmatprep.subr.mxu0 0.0
        %672 = vmatpush1.msra.mxu0 %v642
        %673 = vmatprep.subr.mxu0 0.0
        %674 = vmatpush1.msra.mxu0 %v643
        %675 = vmatprep.subr.mxu0 0.0
        %676 = vmatpush1.msra.mxu0 %v644
        %677 = vmatprep.subr.mxu0 0.0
        %678 = vmatpush1.msra.mxu0 %v645
        %679 = vmatprep.subr.mxu0 0.0
        %680 = vmatpush1.msra.mxu0 %v646
        %681 = vmatprep.subr.mxu0 0.0
        %682 = vmatpush1.msra.mxu0 %v647
        %683 = vmatprep.subr.mxu0 0.0
        %684 = vmatpush1.msra.mxu0 %v648
        %685 = vmatprep.subr.mxu0 0.0
        %686 = vmatpush1.msra.mxu0 %v649
        %687 = vmatprep.subr.mxu0 0.0
        %688 = vmatpush1.msra.mxu0 %v650
        %689 = vmatprep.subr.mxu0 0.0
        %690 = vmatpush1.msra.mxu0 %v651
        %691 = vmatprep.subr.mxu0 0.0
        %692 = vmatpush1.msra.mxu0 0.0
        %693 = vmatprep.subr.mxu0 0.0
        %694 = vmatpush1.msra.mxu0 0.0
        %695 = vmatprep.subr.mxu0 0.0
        %696 = vmatpush1.msra.mxu0 0.0
        %697 = vmatprep.subr.mxu0 0.0
        %698 = vmatpush1.msra.mxu0 0.0
        %699 = vmatprep.subr.mxu0 0.0
        %700 = vmatpush1.msra.mxu0 0.0
        %701 = vmatprep.subr.mxu0 0.0
        %702 = vmatpush1.msra.mxu0 0.0
        %703 = vmatprep.subr.mxu0 0.0
        %704 = vmatpush1.msra.mxu0 0.0
        %705 = vmatprep.subr.mxu0 0.0
        %706 = vmatpush1.msra.mxu0 0.0
        %707 = vmatprep.subr.mxu0 0.0
        %708 = vmatpush1.msra.mxu0 0.0
        %709 = vmatprep.subr.mxu0 0.0
        %710 = vmatpush1.msra.mxu0 0.0
        %711 = vmatprep.subr.mxu0 0.0
        %712 = vmatpush1.msra.mxu0 0.0
        %713 = vmatprep.subr.mxu0 0.0
        %714 = vmatpush1.msra.mxu0 0.0
        %715 = vmatprep.subr.mxu0 0.0
        %716 = vmatpush1.msra.mxu0 0.0
        %717 = vmatprep.subr.mxu0 0.0
        %718 = vmatpush1.msra.mxu0 0.0
        %719 = vmatprep.subr.mxu0 0.0
        %720 = vmatpush1.msra.mxu0 0.0
        %721 = vmatprep.subr.mxu0 0.0
        %722 = vmatpush1.msra.mxu0 0.0
        %723 = vmatprep.mubr.f32.mxu0 0.0
        %724 = vmatmul.mubr.f32.gmra.mrb[0].mxu0 %v634
        %v725 = vpop.f32.mrb[0].mxu0
        %v726 = vadd.f32 %v657, %v725
        %v727 = vpop.f32.mrb[0].mxu0
        %728 = vmatprep.mubr.f32.mxu0 0.0
        %729 = vmatmul.mubr.f32.gmra.mrb[0].mxu0 %v635
        %v730 = vpop.f32.mrb[0].mxu0
        %v731 = vadd.f32 %v657, %v730
        %v732 = vpop.f32.mrb[0].mxu0
        %733 = vdwg.mxu0
        %734 = vst [vmem:[%s431] sm:$0xff] %v726
        %735 = vst [vmem:[%s431 + $0x8] sm:$0xff] %v731
        %s736 = sand.u32 %s221, 1
        %s737 = scalar_lea.sflag [#allocation4], %s736
        %s738 = sand.u32 %s221, 1
        %s739 = smul.addr %s738, 16
        %s740 = scalar_lea.vmem [#allocation10], %s739
        // Predicated region
        $region65: #{tpu_custom_call.1} parent=47 // pred_check
          %p741 = pneg %p231
        $region66: #{tpu_custom_call.1} parent=47 // pred_check_branch
          %743 = sbr.rel (%p741) target = $region68
        $region67: #{tpu_custom_call.1} parent=47 // pred_region
          %s744 = smul.u32 2, %s35
          %s746 = ssub.s32 256, 256
          %747 = vsyncadd %s737, %s746
          %s748 = smul.addr %s34, 2
          %s749 = sadd.s32 %s744, %s748
          %s750 = smul.addr %s749, 128
          %s751 = scalar_lea.hbm %s7, %s750
          %s752 = sshll.u32 %s740, 4
          %s753 = int_to_ptr.vmem [resolvable:$true] %s752
          %758 = dma.vmem_to_hbm [thread:$0]  %s753, 256, %s751, %s737, 128, 128, 8
        $region68: #{tpu_custom_call.1} parent=47 // pred_fallthru
          _
      $region48: #{tpu_custom_call.1} parent=5 // pred_fallthru
        _
      %p759 = scmp.le.s32.totalorder 2, %s25
      // Predicated region
      $region69: #{tpu_custom_call.1} parent=5 // pred_check
        %p760 = pneg %p759
      $region70: #{tpu_custom_call.1} parent=5 // pred_check_branch
        %762 = sbr.rel (%p760) target = $region72
      $region71: #{tpu_custom_call.1} parent=5 // pred_region
        %s763 = ssub.s32 %s25, 2
        // Predicated region
        $region73: #{tpu_custom_call.1} parent=71 // pred_check
          %p764 = pneg %p237
        $region74: #{tpu_custom_call.1} parent=71 // pred_check_branch
          %766 = sbr.rel (%p764) target = $region76
        $region75: #{tpu_custom_call.1} parent=71 // pred_region
          %s767 = sand.u32 %s222, 1
          %s768 = scalar_lea.sflag [#allocation4], %s767
          %s769 = sand.u32 %s222, 1
          %s770 = smul.addr %s769, 16
          %s771 = scalar_lea.vmem [#allocation10], %s770
          %772 = dma.done %s768, 256
        $region76: #{tpu_custom_call.1} parent=71 // pred_fallthru
          _
      $region72: #{tpu_custom_call.1} parent=5 // pred_fallthru
        _
    $region6: #{tpu_custom_call.1} parent=1 // loop_footer
      %s29 = sadd.s32 1, %s25
    $region7: #{tpu_custom_call.1} parent=1 // loop_footer_branch
      %24 = sbr.rel target = $region3
    $region8: #{tpu_custom_call.1} parent=1 // loop_exit
      _
    %773 = vsyncpa [#allocation3], 1
    %s774 = scalar_lea.sflag [#allocation3], 1
    %775 = vsyncpa %s774, 1
    %776 = vsyncpa [#allocation6], 1
    %s777 = scalar_lea.sflag [#allocation6], 1
    %778 = vsyncpa %s777, 1
    %779 = vsyncpa [#allocation9], 1
    %s780 = scalar_lea.sflag [#allocation9], 1
    %781 = vsyncpa %s780, 1
    %782 = vsyncpa [#allocation4], 1
    %s783 = scalar_lea.sflag [#allocation4], 1
    %784 = vsyncpa %s783, 1

</llo_original>
